<compile_context>
chip_gen: v5e
topology: v5e:2x2
jax: 0.10.0
libtpu: 0.0.40
codegen_flags: <defaults>
</compile_context>

<pallas_src>
import functools
import math

import jax
import jax.numpy as jnp
from jax.experimental import pallas as pl
from jax.experimental.pallas import tpu as pltpu  # noqa: F401  (TPU backend)


# ----------------------------------------------------------------------------
# Fused kernel: encoder block + CLS pooling + classifier + BCEWithLogitsLoss
# ----------------------------------------------------------------------------
def _entail_fused_kernel(x_ref, bias_ref, wqkv_ref, wo_ref,
                         ln1_g_ref, ln1_b_ref,
                         w1_ref, b1_ref, w2_ref, b2_ref,
                         ln2_g_ref, ln2_b_ref,
                         cls_w_ref, cls_b_ref, y_ref,
                         z_ref, prob_ref, loss_ref,
                         *, batch, seq, emb_size):
    f32 = jnp.float32
    bf16 = jnp.bfloat16
    E = emb_size

    x = x_ref[...].astype(f32)                               # (B*S, E)

    # --- fused QKV projection: one wide MXU matmul over the whole batch slab
    qkv = jnp.dot(x.astype(bf16), wqkv_ref[...].astype(bf16),
                  preferred_element_type=f32)                # (B*S, 3E)
    scale = 1.0 / math.sqrt(float(E))
    q = qkv[:, :E] * scale                                   # fold scale into q
    k = qkv[:, E:2 * E]
    v = qkv[:, 2 * E:]

    q3 = q.reshape(batch, seq, E)
    k3 = k.reshape(batch, seq, E)
    v3 = v.reshape(batch, seq, E)

    # --- single-head attention (batched, contraction on last dims: no k.T)
    s = jnp.einsum('bqd,bkd->bqk', q3.astype(bf16), k3.astype(bf16),
                   preferred_element_type=f32)               # (B, S, S)
    s = s + bias_ref[...]                                    # (B, 1, S) pad mask
    s = s - jnp.max(s, axis=-1, keepdims=True)
    p = jnp.exp(s)
    p = p * pl.reciprocal(jnp.sum(p, axis=-1, keepdims=True), approx=True)
    attn = jnp.einsum('bqk,bkd->bqd', p.astype(bf16), v3.astype(bf16),
                      preferred_element_type=f32)            # (B, S, E)
    attn = attn.reshape(batch * seq, E)
    attn = jnp.dot(attn.astype(bf16), wo_ref[...].astype(bf16),
                   preferred_element_type=f32)               # (B*S, E)

    # --- residual + LayerNorm 1 (f32)
    h = x + attn
    mu = jnp.mean(h, axis=-1, keepdims=True)
    var = jnp.mean((h - mu) ** 2, axis=-1, keepdims=True)
    h = (h - mu) * jax.lax.rsqrt(var + 1e-5) * ln1_g_ref[...] + ln1_b_ref[...]

    # --- feed-forward (GELU)
    f = jnp.dot(h.astype(bf16), w1_ref[...].astype(bf16),
                preferred_element_type=f32) + b1_ref[...]
    f = jax.nn.gelu(f)
    f = jnp.dot(f.astype(bf16), w2_ref[...].astype(bf16),
                preferred_element_type=f32) + b2_ref[...]

    # --- residual + LayerNorm 2 (f32)
    h2 = h + f
    mu2 = jnp.mean(h2, axis=-1, keepdims=True)
    var2 = jnp.mean((h2 - mu2) ** 2, axis=-1, keepdims=True)
    h2 = (h2 - mu2) * jax.lax.rsqrt(var2 + 1e-5) * ln2_g_ref[...] + ln2_b_ref[...]

    # --- CLS pooling: only row 0 of each batch element is consumed downstream
    cls = h2.reshape(batch, seq, E)[:, 0, :]                 # (B, E)
    z_ref[...] = cls.astype(z_ref.dtype)

    # --- classifier Linear(E, 1) as a VPU reduction (no N=1 MXU matmul)
    logits = jnp.sum(cls * cls_w_ref[...], axis=-1, keepdims=True) + cls_b_ref[...]
    prob_ref[...] = logits.astype(prob_ref.dtype)            # pre-sigmoid logits
                                                             # (matches PyTorch
                                                             # `prob = classifier(..)`)

    # --- BCEWithLogitsLoss (mean reduction), numerically stable
    yv = y_ref[...].astype(f32)
    per = jnp.maximum(logits, 0.0) - logits * yv + jnp.log1p(jnp.exp(-jnp.abs(logits)))
    loss_ref[...] = jnp.mean(per, keepdims=True)             # (1, 1)


def entail_fused(x2d, bias, y, params, *, batch, seq):
    """x2d: [B*S, E], bias: [B, 1, S], y: [B, 1] -> (z_t [B,E], prob [B,1], loss [1,1])."""
    _, E = x2d.shape
    kernel = functools.partial(_entail_fused_kernel,
                               batch=batch, seq=seq, emb_size=E)
    return pl.pallas_call(
        kernel,
        out_shape=(jax.ShapeDtypeStruct((batch, E), jnp.float32),   # z_t (CLS)
                   jax.ShapeDtypeStruct((batch, 1), jnp.float32),   # prob/logits
                   jax.ShapeDtypeStruct((1, 1), jnp.float32)),      # loss
    )(x2d, bias,
      params["wqkv"], params["wo"],
      params["ln1_g"], params["ln1_b"],
      params["w1"], params["b1"], params["w2"], params["b2"],
      params["ln2_g"], params["ln2_b"],
      params["cls_w"], params["cls_b"], y)


# ----------------------------------------------------------------------------
# Parameter initialization (deterministic, synthetic)
# ----------------------------------------------------------------------------
def init_params(key, vocab_size, emb_size, ffn_size, pad_idx):
    ks = jax.random.split(key, 8)
    scale = 0.02
    emb = scale * jax.random.normal(ks[0], (vocab_size, emb_size), jnp.float32)
    emb = emb.at[pad_idx].set(0.0)
    params = {
        "emb": emb,
        "wqkv": scale * jax.random.normal(ks[1], (emb_size, 3 * emb_size), jnp.float32),
        "wo": scale * jax.random.normal(ks[2], (emb_size, emb_size), jnp.float32),
        "ln1_g": jnp.ones((1, emb_size), jnp.float32),
        "ln1_b": jnp.zeros((1, emb_size), jnp.float32),
        "w1": scale * jax.random.normal(ks[3], (emb_size, ffn_size), jnp.float32),
        "b1": jnp.zeros((1, ffn_size), jnp.float32),
        "w2": scale * jax.random.normal(ks[4], (ffn_size, emb_size), jnp.float32),
        "b2": jnp.zeros((1, emb_size), jnp.float32),
        "ln2_g": jnp.ones((1, emb_size), jnp.float32),
        "ln2_b": jnp.zeros((1, emb_size), jnp.float32),
        "cls_w": scale * jax.random.normal(ks[5], (1, emb_size), jnp.float32),
        "cls_b": jnp.zeros((1, 1), jnp.float32),
    }
    return params


# ----------------------------------------------------------------------------
# EntailmentModel.forward equivalent
# ----------------------------------------------------------------------------
def entailment_forward(input_idx, y, params, pad_idx):
    B, S = input_idx.shape
    # embedding lookup (glue), already laid out as a (B*S, E) slab
    x2d = jnp.take(params["emb"], input_idx.reshape(-1), axis=0)     # [B*S, E]
    # additive attention mask: pad key positions get -1e9
    bias = jnp.where(input_idx == pad_idx, -1e9, 0.0).astype(jnp.float32)
    bias = bias[:, None, :]                                          # [B, 1, S]
    z_t, prob, loss = entail_fused(x2d, bias, y, params, batch=B, seq=S)
    return {"prob": prob, "loss": loss[0, 0], "z_t": z_t}


if __name__ == "__main__":
    # small, module-consistent shapes
    B, S = 2, 8                # batch, sequence
    EMB = 32                   # config.emb_size == config.distil_size
    FFN = 64
    VOCAB = 50
    PAD_IDX, EOS_IDX = 0, 2

    key = jax.random.PRNGKey(0)
    k_inp, k_y, k_par = jax.random.split(key, 3)

    input_idx = jax.random.randint(k_inp, (B, S), minval=3, maxval=VOCAB,
                                   dtype=jnp.int32)
    input_idx = input_idx.at[:, -1].set(EOS_IDX)
    y = jax.random.bernoulli(k_y, 0.5, (B, 1)).astype(jnp.float32)

    params = init_params(k_par, VOCAB, EMB, FFN, PAD_IDX)

    result = entailment_forward(input_idx, y, params, PAD_IDX)
    jax.block_until_ready(result)

    assert result["prob"].shape == (B, 1)
    assert result["z_t"].shape == (B, EMB)
    assert result["loss"].shape == ()
    print("KERNEL_OK")
</pallas_src>

<mosaic_0001>
module attributes {stable_mosaic.version = 11 : i64} {
  func.func @_entail_fused_kernel(%arg0: memref<16x32xf32, #tpu.memory_space<vmem>>, %arg1: memref<2x1x8xf32, #tpu.memory_space<vmem>>, %arg2: memref<32x96xf32, #tpu.memory_space<vmem>>, %arg3: memref<32x32xf32, #tpu.memory_space<vmem>>, %arg4: memref<1x32xf32, #tpu.memory_space<vmem>>, %arg5: memref<1x32xf32, #tpu.memory_space<vmem>>, %arg6: memref<32x64xf32, #tpu.memory_space<vmem>>, %arg7: memref<1x64xf32, #tpu.memory_space<vmem>>, %arg8: memref<64x32xf32, #tpu.memory_space<vmem>>, %arg9: memref<1x32xf32, #tpu.memory_space<vmem>>, %arg10: memref<1x32xf32, #tpu.memory_space<vmem>>, %arg11: memref<1x32xf32, #tpu.memory_space<vmem>>, %arg12: memref<1x32xf32, #tpu.memory_space<vmem>>, %arg13: memref<1x1xf32, #tpu.memory_space<vmem>>, %arg14: memref<2x1xf32, #tpu.memory_space<vmem>>, %arg15: memref<2x32xf32, #tpu.memory_space<vmem>>, %arg16: memref<2x1xf32, #tpu.memory_space<vmem>>, %arg17: memref<1x1xf32, #tpu.memory_space<vmem>>) attributes {dimension_semantics = [], scalar_prefetch = 0 : i64, scratch_operands = 0 : i64, tpu.core_type = #tpu.core_type<tc>} {
    %c0 = arith.constant 0 : index
    %c0_0 = arith.constant 0 : index
    %0 = vector.load %arg0[%c0, %c0_0] : memref<16x32xf32, #tpu.memory_space<vmem>>, vector<16x32xf32>
    %1 = arith.truncf %0 : vector<16x32xf32> to vector<16x32xbf16>
    %c0_1 = arith.constant 0 : index
    %c0_2 = arith.constant 0 : index
    %2 = vector.load %arg2[%c0_1, %c0_2] : memref<32x96xf32, #tpu.memory_space<vmem>>, vector<32x96xf32>
    %3 = arith.truncf %2 : vector<32x96xf32> to vector<32x96xbf16>
    %cst = arith.constant dense<0.000000e+00> : vector<16x96xf32>
    %4 = tpu.matmul %1, %3, %cst {dimension_numbers = #tpu.dot_dimension_numbers<[1], [0], [0], [1], [0, 0, 1, 1], [], []>} : vector<16x32xbf16>, vector<32x96xbf16>, vector<16x96xf32> -> vector<16x96xf32>
    %5 = vector.extract_strided_slice %4 {offsets = [0, 0], sizes = [16, 32], strides = [1, 1]} : vector<16x96xf32> to vector<16x32xf32>
    %cst_3 = arith.constant 0.176776692 : f32
    %6 = vector.broadcast %cst_3 : f32 to vector<16x32xf32>
    %7 = arith.mulf %5, %6 : vector<16x32xf32>
    %8 = vector.extract_strided_slice %4 {offsets = [0, 32], sizes = [16, 32], strides = [1, 1]} : vector<16x96xf32> to vector<16x32xf32>
    %9 = vector.extract_strided_slice %4 {offsets = [0, 64], sizes = [16, 32], strides = [1, 1]} : vector<16x96xf32> to vector<16x32xf32>
    %10 = vector.shape_cast %7 : vector<16x32xf32> to vector<2x8x32xf32>
    %11 = vector.shape_cast %8 : vector<16x32xf32> to vector<2x8x32xf32>
    %12 = vector.shape_cast %9 : vector<16x32xf32> to vector<2x8x32xf32>
    %13 = arith.truncf %10 : vector<2x8x32xf32> to vector<2x8x32xbf16>
    %14 = arith.truncf %11 : vector<2x8x32xf32> to vector<2x8x32xbf16>
    "tpu.trace_start"() <{level = 10 : i32, message = "bqd,bkd->bqk"}> : () -> ()
    %cst_4 = arith.constant dense<0.000000e+00> : vector<2x8x8xf32>
    %15 = tpu.matmul %13, %14, %cst_4 {dimension_numbers = #tpu.dot_dimension_numbers<[2], [2], [1], [1], [0, 0, 0, 1, 1, 1], [0], [0]>} : vector<2x8x32xbf16>, vector<2x8x32xbf16>, vector<2x8x8xf32> -> vector<2x8x8xf32>
    "tpu.trace_stop"() : () -> ()
    %c0_5 = arith.constant 0 : index
    %c0_6 = arith.constant 0 : index
    %c0_7 = arith.constant 0 : index
    %16 = vector.load %arg1[%c0_5, %c0_6, %c0_7] : memref<2x1x8xf32, #tpu.memory_space<vmem>>, vector<2x1x8xf32>
    %17 = vector.broadcast %16 : vector<2x1x8xf32> to vector<2x8x8xf32>
    %18 = arith.addf %15, %17 : vector<2x8x8xf32>
    %cst_8 = arith.constant dense<0xFF800000> : vector<2x8xf32>
    %19 = vector.multi_reduction <maximumf>, %18, %cst_8 [2] : vector<2x8x8xf32> to vector<2x8xf32>
    %20 = vector.shape_cast %19 : vector<2x8xf32> to vector<2x8x1xf32>
    %21 = vector.broadcast %20 : vector<2x8x1xf32> to vector<2x8x8xf32>
    %22 = arith.subf %18, %21 : vector<2x8x8xf32>
    %23 = math.exp %22 : vector<2x8x8xf32>
    %cst_9 = arith.constant dense<0.000000e+00> : vector<2x8xf32>
    %24 = vector.multi_reduction <add>, %23, %cst_9 [2] : vector<2x8x8xf32> to vector<2x8xf32>
    %25 = vector.shape_cast %24 : vector<2x8xf32> to vector<2x8x1xf32>
    %26 = tpu.reciprocal %25 {approx = true} : vector<2x8x1xf32> -> vector<2x8x1xf32>
    %27 = vector.broadcast %26 : vector<2x8x1xf32> to vector<2x8x8xf32>
    %28 = arith.mulf %23, %27 : vector<2x8x8xf32>
    %29 = arith.truncf %28 : vector<2x8x8xf32> to vector<2x8x8xbf16>
    %30 = arith.truncf %12 : vector<2x8x32xf32> to vector<2x8x32xbf16>
    "tpu.trace_start"() <{level = 10 : i32, message = "bqk,bkd->bqd"}> : () -> ()
    %cst_10 = arith.constant dense<0.000000e+00> : vector<2x8x32xf32>
    %31 = tpu.matmul %29, %30, %cst_10 {dimension_numbers = #tpu.dot_dimension_numbers<[2], [1], [1], [2], [0, 0, 0, 1, 1, 2], [0], [0]>} : vector<2x8x8xbf16>, vector<2x8x32xbf16>, vector<2x8x32xf32> -> vector<2x8x32xf32>
    "tpu.trace_stop"() : () -> ()
    %32 = vector.shape_cast %31 : vector<2x8x32xf32> to vector<16x32xf32>
    %33 = arith.truncf %32 : vector<16x32xf32> to vector<16x32xbf16>
    %c0_11 = arith.constant 0 : index
    %c0_12 = arith.constant 0 : index
    %34 = vector.load %arg3[%c0_11, %c0_12] : memref<32x32xf32, #tpu.memory_space<vmem>>, vector<32x32xf32>
    %35 = arith.truncf %34 : vector<32x32xf32> to vector<32x32xbf16>
    %cst_13 = arith.constant dense<0.000000e+00> : vector<16x32xf32>
    %36 = tpu.matmul %33, %35, %cst_13 {dimension_numbers = #tpu.dot_dimension_numbers<[1], [0], [0], [1], [0, 0, 1, 1], [], []>} : vector<16x32xbf16>, vector<32x32xbf16>, vector<16x32xf32> -> vector<16x32xf32>
    %37 = arith.addf %0, %36 : vector<16x32xf32>
    %cst_14 = arith.constant dense<0.000000e+00> : vector<16xf32>
    %38 = vector.multi_reduction <add>, %37, %cst_14 [1] : vector<16x32xf32> to vector<16xf32>
    %39 = vector.shape_cast %38 : vector<16xf32> to vector<16x1xf32>
    %cst_15 = arith.constant 3.200000e+01 : f32
    %40 = vector.broadcast %cst_15 : f32 to vector<16x1xf32>
    %41 = arith.divf %39, %40 : vector<16x1xf32>
    %42 = vector.broadcast %41 : vector<16x1xf32> to vector<16x32xf32>
    %43 = arith.subf %37, %42 : vector<16x32xf32>
    %44 = arith.mulf %43, %43 : vector<16x32xf32>
    %cst_16 = arith.constant dense<0.000000e+00> : vector<16xf32>
    %45 = vector.multi_reduction <add>, %44, %cst_16 [1] : vector<16x32xf32> to vector<16xf32>
    %46 = vector.shape_cast %45 : vector<16xf32> to vector<16x1xf32>
    %cst_17 = arith.constant 3.200000e+01 : f32
    %47 = vector.broadcast %cst_17 : f32 to vector<16x1xf32>
    %48 = arith.divf %46, %47 : vector<16x1xf32>
    %49 = vector.broadcast %41 : vector<16x1xf32> to vector<16x32xf32>
    %50 = arith.subf %37, %49 : vector<16x32xf32>
    %cst_18 = arith.constant 9.99999974E-6 : f32
    %51 = vector.broadcast %cst_18 : f32 to vector<16x1xf32>
    %52 = arith.addf %48, %51 : vector<16x1xf32>
    %53 = math.rsqrt %52 : vector<16x1xf32>
    %54 = vector.broadcast %53 : vector<16x1xf32> to vector<16x32xf32>
    %55 = arith.mulf %50, %54 : vector<16x32xf32>
    %c0_19 = arith.constant 0 : index
    %c0_20 = arith.constant 0 : index
    %56 = vector.load %arg4[%c0_19, %c0_20] : memref<1x32xf32, #tpu.memory_space<vmem>>, vector<1x32xf32>
    %57 = vector.broadcast %56 : vector<1x32xf32> to vector<16x32xf32>
    %58 = arith.mulf %55, %57 : vector<16x32xf32>
    %c0_21 = arith.constant 0 : index
    %c0_22 = arith.constant 0 : index
    %59 = vector.load %arg5[%c0_21, %c0_22] : memref<1x32xf32, #tpu.memory_space<vmem>>, vector<1x32xf32>
    %60 = vector.broadcast %59 : vector<1x32xf32> to vector<16x32xf32>
    %61 = arith.addf %58, %60 : vector<16x32xf32>
    %62 = arith.truncf %61 : vector<16x32xf32> to vector<16x32xbf16>
    %c0_23 = arith.constant 0 : index
    %c0_24 = arith.constant 0 : index
    %63 = vector.load %arg6[%c0_23, %c0_24] : memref<32x64xf32, #tpu.memory_space<vmem>>, vector<32x64xf32>
    %64 = arith.truncf %63 : vector<32x64xf32> to vector<32x64xbf16>
    %cst_25 = arith.constant dense<0.000000e+00> : vector<16x64xf32>
    %65 = tpu.matmul %62, %64, %cst_25 {dimension_numbers = #tpu.dot_dimension_numbers<[1], [0], [0], [1], [0, 0, 1, 1], [], []>} : vector<16x32xbf16>, vector<32x64xbf16>, vector<16x64xf32> -> vector<16x64xf32>
    %c0_26 = arith.constant 0 : index
    %c0_27 = arith.constant 0 : index
    %66 = vector.load %arg7[%c0_26, %c0_27] : memref<1x64xf32, #tpu.memory_space<vmem>>, vector<1x64xf32>
    %67 = vector.broadcast %66 : vector<1x64xf32> to vector<16x64xf32>
    %68 = arith.addf %65, %67 : vector<16x64xf32>
    %69 = arith.mulf %68, %68 : vector<16x64xf32>
    %70 = arith.mulf %68, %69 : vector<16x64xf32>
    %cst_28 = arith.constant 4.471500e-02 : f32
    %71 = vector.broadcast %cst_28 : f32 to vector<16x64xf32>
    %72 = arith.mulf %71, %70 : vector<16x64xf32>
    %73 = arith.addf %68, %72 : vector<16x64xf32>
    %cst_29 = arith.constant 0.797884583 : f32
    %74 = vector.broadcast %cst_29 : f32 to vector<16x64xf32>
    %75 = arith.mulf %74, %73 : vector<16x64xf32>
    %76 = math.tanh %75 : vector<16x64xf32>
    %cst_30 = arith.constant 1.000000e+00 : f32
    %77 = vector.broadcast %cst_30 : f32 to vector<16x64xf32>
    %78 = arith.addf %77, %76 : vector<16x64xf32>
    %cst_31 = arith.constant 5.000000e-01 : f32
    %79 = vector.broadcast %cst_31 : f32 to vector<16x64xf32>
    %80 = arith.mulf %79, %78 : vector<16x64xf32>
    %81 = arith.mulf %68, %80 : vector<16x64xf32>
    %82 = arith.truncf %81 : vector<16x64xf32> to vector<16x64xbf16>
    %c0_32 = arith.constant 0 : index
    %c0_33 = arith.constant 0 : index
    %83 = vector.load %arg8[%c0_32, %c0_33] : memref<64x32xf32, #tpu.memory_space<vmem>>, vector<64x32xf32>
    %84 = arith.truncf %83 : vector<64x32xf32> to vector<64x32xbf16>
    %cst_34 = arith.constant dense<0.000000e+00> : vector<16x32xf32>
    %85 = tpu.matmul %82, %84, %cst_34 {dimension_numbers = #tpu.dot_dimension_numbers<[1], [0], [0], [1], [0, 0, 1, 1], [], []>} : vector<16x64xbf16>, vector<64x32xbf16>, vector<16x32xf32> -> vector<16x32xf32>
    %c0_35 = arith.constant 0 : index
    %c0_36 = arith.constant 0 : index
    %86 = vector.load %arg9[%c0_35, %c0_36] : memref<1x32xf32, #tpu.memory_space<vmem>>, vector<1x32xf32>
    %87 = vector.broadcast %86 : vector<1x32xf32> to vector<16x32xf32>
    %88 = arith.addf %85, %87 : vector<16x32xf32>
    %89 = arith.addf %61, %88 : vector<16x32xf32>
    %cst_37 = arith.constant dense<0.000000e+00> : vector<16xf32>
    %90 = vector.multi_reduction <add>, %89, %cst_37 [1] : vector<16x32xf32> to vector<16xf32>
    %91 = vector.shape_cast %90 : vector<16xf32> to vector<16x1xf32>
    %cst_38 = arith.constant 3.200000e+01 : f32
    %92 = vector.broadcast %cst_38 : f32 to vector<16x1xf32>
    %93 = arith.divf %91, %92 : vector<16x1xf32>
    %94 = vector.broadcast %93 : vector<16x1xf32> to vector<16x32xf32>
    %95 = arith.subf %89, %94 : vector<16x32xf32>
    %96 = arith.mulf %95, %95 : vector<16x32xf32>
    %cst_39 = arith.constant dense<0.000000e+00> : vector<16xf32>
    %97 = vector.multi_reduction <add>, %96, %cst_39 [1] : vector<16x32xf32> to vector<16xf32>
    %98 = vector.shape_cast %97 : vector<16xf32> to vector<16x1xf32>
    %cst_40 = arith.constant 3.200000e+01 : f32
    %99 = vector.broadcast %cst_40 : f32 to vector<16x1xf32>
    %100 = arith.divf %98, %99 : vector<16x1xf32>
    %101 = vector.broadcast %93 : vector<16x1xf32> to vector<16x32xf32>
    %102 = arith.subf %89, %101 : vector<16x32xf32>
    %cst_41 = arith.constant 9.99999974E-6 : f32
    %103 = vector.broadcast %cst_41 : f32 to vector<16x1xf32>
    %104 = arith.addf %100, %103 : vector<16x1xf32>
    %105 = math.rsqrt %104 : vector<16x1xf32>
    %106 = vector.broadcast %105 : vector<16x1xf32> to vector<16x32xf32>
    %107 = arith.mulf %102, %106 : vector<16x32xf32>
    %c0_42 = arith.constant 0 : index
    %c0_43 = arith.constant 0 : index
    %108 = vector.load %arg10[%c0_42, %c0_43] : memref<1x32xf32, #tpu.memory_space<vmem>>, vector<1x32xf32>
    %109 = vector.broadcast %108 : vector<1x32xf32> to vector<16x32xf32>
    %110 = arith.mulf %107, %109 : vector<16x32xf32>
    %c0_44 = arith.constant 0 : index
    %c0_45 = arith.constant 0 : index
    %111 = vector.load %arg11[%c0_44, %c0_45] : memref<1x32xf32, #tpu.memory_space<vmem>>, vector<1x32xf32>
    %112 = vector.broadcast %111 : vector<1x32xf32> to vector<16x32xf32>
    %113 = arith.addf %110, %112 : vector<16x32xf32>
    %114 = vector.shape_cast %113 : vector<16x32xf32> to vector<2x8x32xf32>
    %115 = vector.extract_strided_slice %114 {offsets = [0, 0, 0], sizes = [2, 1, 32], strides = [1, 1, 1]} : vector<2x8x32xf32> to vector<2x1x32xf32>
    %116 = vector.shape_cast %115 : vector<2x1x32xf32> to vector<2x32xf32>
    %c0_46 = arith.constant 0 : index
    %c0_47 = arith.constant 0 : index
    %117 = vector.load %arg15[%c0_46, %c0_47] : memref<2x32xf32, #tpu.memory_space<vmem>>, vector<2x32xf32>
    tpu.vector_store %arg15[%c0_46, %c0_47], %116 {strides = array<i32>} : memref<2x32xf32, #tpu.memory_space<vmem>>, vector<2x32xf32>,
    %c0_48 = arith.constant 0 : index
    %c0_49 = arith.constant 0 : index
    %118 = vector.load %arg12[%c0_48, %c0_49] : memref<1x32xf32, #tpu.memory_space<vmem>>, vector<1x32xf32>
    %119 = vector.broadcast %118 : vector<1x32xf32> to vector<2x32xf32>
    %120 = arith.mulf %116, %119 : vector<2x32xf32>
    %cst_50 = arith.constant dense<0.000000e+00> : vector<2xf32>
    %121 = vector.multi_reduction <add>, %120, %cst_50 [1] : vector<2x32xf32> to vector<2xf32>
    %122 = vector.shape_cast %121 : vector<2xf32> to vector<2x1xf32>
    %c0_51 = arith.constant 0 : index
    %c0_52 = arith.constant 0 : index
    %123 = vector.load %arg13[%c0_51, %c0_52] : memref<1x1xf32, #tpu.memory_space<vmem>>, vector<1x1xf32>
    %124 = vector.broadcast %123 : vector<1x1xf32> to vector<2x1xf32>
    %125 = arith.addf %122, %124 : vector<2x1xf32>
    %c0_53 = arith.constant 0 : index
    %c0_54 = arith.constant 0 : index
    %126 = vector.load %arg16[%c0_53, %c0_54] : memref<2x1xf32, #tpu.memory_space<vmem>>, vector<2x1xf32>
    tpu.vector_store %arg16[%c0_53, %c0_54], %125 {strides = array<i32>} : memref<2x1xf32, #tpu.memory_space<vmem>>, vector<2x1xf32>,
    %c0_55 = arith.constant 0 : index
    %c0_56 = arith.constant 0 : index
    %127 = vector.load %arg14[%c0_55, %c0_56] : memref<2x1xf32, #tpu.memory_space<vmem>>, vector<2x1xf32>
    %cst_57 = arith.constant 0.000000e+00 : f32
    %128 = vector.broadcast %cst_57 : f32 to vector<2x1xf32>
    %129 = arith.maximumf %125, %128 : vector<2x1xf32>
    %130 = arith.mulf %125, %127 : vector<2x1xf32>
    %131 = arith.subf %129, %130 : vector<2x1xf32>
    %132 = math.absf %125 : vector<2x1xf32>
    %cst_58 = arith.constant 0.000000e+00 : f32
    %133 = vector.broadcast %cst_58 : f32 to vector<2x1xf32>
    %134 = arith.subf %133, %132 : vector<2x1xf32>
    %135 = math.exp %134 : vector<2x1xf32>
    %136 = math.log1p %135 : vector<2x1xf32>
    %137 = arith.addf %131, %136 : vector<2x1xf32>
    %138 = vector.shape_cast %137 : vector<2x1xf32> to vector<1x2x1xf32>
    %cst_59 = arith.constant dense<0.000000e+00> : vector<1xf32>
    %139 = vector.multi_reduction <add>, %138, %cst_59 [1, 2] : vector<1x2x1xf32> to vector<1xf32>
    %140 = vector.shape_cast %139 : vector<1xf32> to vector<1x1x1xf32>
    %141 = vector.extract %140[0, 0, 0] : f32 from vector<1x1x1xf32>
    %142 = vector.broadcast %141 : f32 to vector<1x1xf32>
    %cst_60 = arith.constant 2.000000e+00 : f32
    %143 = vector.broadcast %cst_60 : f32 to vector<1x1xf32>
    %144 = arith.divf %142, %143 : vector<1x1xf32>
    %c0_61 = arith.constant 0 : index
    %c0_62 = arith.constant 0 : index
    %145 = vector.load %arg17[%c0_61, %c0_62] : memref<1x1xf32, #tpu.memory_space<vmem>>, vector<1x1xf32>
    tpu.vector_store %arg17[%c0_61, %c0_62], %144 {strides = array<i32>} : memref<1x1xf32, #tpu.memory_space<vmem>>, vector<1x1xf32>,
    return
  }
}

</mosaic_0001>

<llo_original>
// kernel: tpu_custom_call.1
$region0: #{tpu_custom_call.1}
  #allocation0 [shape = 'u32[]', space=smem, size = 0x4, offset = 0x4, fixed_abs, tag = 'smem constant byte address 0x4 - core index']
  #allocation1 [shape = 'u32[72,128]{1,0:T(1,128)}', space=vmem, size = 0x9000, scoped, tag = 'internal scratch']
  #allocation2 [shape = 'f32[1,1]{1,0:T(1,128)S(1)}', space=vmem, size = 0x200, scoped, tag = 'scoped memory for tpu_custom_call.1']
  %s0 = inlined_call_operand.hbm [shape: f32[16,32], index: 0, kind: input, shape index: {}]
  %s1 = inlined_call_operand.vmem [shape: f32[2,1,8], index: 1, kind: input, shape index: {}]
  %s2 = inlined_call_operand.vmem [shape: f32[32,96], index: 2, kind: input, shape index: {}]
  %s3 = inlined_call_operand.vmem [shape: f32[32,32], index: 3, kind: input, shape index: {}]
  %s4 = inlined_call_operand.vmem [shape: f32[1,32], index: 4, kind: input, shape index: {}]
  %s5 = inlined_call_operand.vmem [shape: f32[1,32], index: 5, kind: input, shape index: {}]
  %s6 = inlined_call_operand.vmem [shape: f32[32,64], index: 6, kind: input, shape index: {}]
  %s7 = inlined_call_operand.vmem [shape: f32[1,64], index: 7, kind: input, shape index: {}]
  %s8 = inlined_call_operand.vmem [shape: f32[64,32], index: 8, kind: input, shape index: {}]
  %s9 = inlined_call_operand.vmem [shape: f32[1,32], index: 9, kind: input, shape index: {}]
  %s10 = inlined_call_operand.vmem [shape: f32[1,32], index: 10, kind: input, shape index: {}]
  %s11 = inlined_call_operand.vmem [shape: f32[1,32], index: 11, kind: input, shape index: {}]
  %s12 = inlined_call_operand.vmem [shape: f32[1,32], index: 12, kind: input, shape index: {}]
  %s13 = inlined_call_operand.<no memory space> [shape: f32[1,1], index: 13, kind: input, shape index: {}]
  %s14 = inlined_call_operand.vmem [shape: f32[2,1], index: 14, kind: input, shape index: {}]
  %s15 = inlined_call_operand.hbm [shape: f32[2,32], index: 15, kind: output, shape index: {0}]
  %s16 = inlined_call_operand.vmem [shape: f32[2,1], index: 16, kind: output, shape index: {1}]
  %s17 = inlined_call_operand.hbm [shape: f32[1,1], index: 17, kind: output, shape index: {2}]
  %18 = xla_tuple %s15, %s16, %s17
  %s19 = sld [smem:[#allocation0]]
  $region90: #{tpu_custom_call.1} parent=0
    _
  %s21 = ssub.s32 1, %s19
  %s22 = scalar_select 0, %s21, %s19
  %v23 = vstv %s13
  %24 = vst [vmem:[#allocation2] sm:$0x1] %v23
  $region1: #{tpu_custom_call.1} parent=0
    #allocation3 [shape = 'u8[8192]{0}', space=vmem, size = 0x2000, scoped, tag = 'input window, operand 0, single buffered']
    #allocation4 [shape = 's32[1]{0}', space=sflag, size = 0x4, scoped, tag = 'scoped memory for tpu_custom_call.1']
    #allocation5 [shape = 's32[1]{0}', space=sflag, size = 0x4, scoped, tag = 'scoped memory for tpu_custom_call.1']
    #allocation6 [shape = 'u8[1024]{0}', space=vmem, size = 0x400, scoped, tag = 'output window, operand 0, single buffered']
    #allocation7 [shape = 'u8[512]{0}', space=vmem, size = 0x400, scoped, tag = 'output window, operand 2, single buffered']
    #allocation8 [shape = 's32[1]{0}', space=sflag, size = 0x4, scoped, tag = 'scoped memory for tpu_custom_call.1']
    %25 = vsyncpa [#allocation4], 0
    %26 = vsyncpa [#allocation5], 0
    %27 = vsyncpa [#allocation8], 0
    // Predicated region
    $region2: #{tpu_custom_call.1} parent=1 // pred_check
      _
    $region3: #{tpu_custom_call.1} parent=1 // pred_check_branch
      %29 = sbr.rel (0) target = $region5
    $region4: #{tpu_custom_call.1} parent=1 // pred_region
      %31 = vsyncadd [#allocation4], 0
      %s32 = sshll.u32 %s0, 4
      %s33 = int_to_ptr.hbm [resolvable:$true] %s32
      %s34 = sshll.u32 [#allocation3], 4
      %s35 = int_to_ptr.vmem [resolvable:$true] %s34
      %40 = dma.hbm_to_vmem [thread:$0]  %s33, 256, %s35, [#allocation4], 128, 128, 8
    $region5: #{tpu_custom_call.1} parent=1 // pred_fallthru
      _
    // Predicated region
    $region6: #{tpu_custom_call.1} parent=1 // pred_check
      _
    $region7: #{tpu_custom_call.1} parent=1 // pred_check_branch
      %42 = sbr.rel (0) target = $region9
    $region8: #{tpu_custom_call.1} parent=1 // pred_region
      _
    $region9: #{tpu_custom_call.1} parent=1 // pred_fallthru
      _
    // Predicated region
    $region10: #{tpu_custom_call.1} parent=1 // pred_check
      _
    $region11: #{tpu_custom_call.1} parent=1 // pred_check_branch
      %44 = sbr.rel (0) target = $region13
    $region12: #{tpu_custom_call.1} parent=1 // pred_region
      _
    $region13: #{tpu_custom_call.1} parent=1 // pred_fallthru
      _
    // Predicated region
    $region14: #{tpu_custom_call.1} parent=1 // pred_check
      _
    $region15: #{tpu_custom_call.1} parent=1 // pred_check_branch
      %46 = sbr.rel (0) target = $region17
    $region16: #{tpu_custom_call.1} parent=1 // pred_region
      _
    $region17: #{tpu_custom_call.1} parent=1 // pred_fallthru
      _
    // Predicated region
    $region18: #{tpu_custom_call.1} parent=1 // pred_check
      _
    $region19: #{tpu_custom_call.1} parent=1 // pred_check_branch
      %48 = sbr.rel (0) target = $region21
    $region20: #{tpu_custom_call.1} parent=1 // pred_region
      _
    $region21: #{tpu_custom_call.1} parent=1 // pred_fallthru
      _
    // Predicated region
    $region22: #{tpu_custom_call.1} parent=1 // pred_check
      _
    $region23: #{tpu_custom_call.1} parent=1 // pred_check_branch
      %50 = sbr.rel (0) target = $region25
    $region24: #{tpu_custom_call.1} parent=1 // pred_region
      _
    $region25: #{tpu_custom_call.1} parent=1 // pred_fallthru
      _
    // Predicated region
    $region26: #{tpu_custom_call.1} parent=1 // pred_check
      _
    $region27: #{tpu_custom_call.1} parent=1 // pred_check_branch
      %52 = sbr.rel (0) target = $region29
    $region28: #{tpu_custom_call.1} parent=1 // pred_region
      _
    $region29: #{tpu_custom_call.1} parent=1 // pred_fallthru
      _
    // Predicated region
    $region30: #{tpu_custom_call.1} parent=1 // pred_check
      _
    $region31: #{tpu_custom_call.1} parent=1 // pred_check_branch
      %54 = sbr.rel (0) target = $region33
    $region32: #{tpu_custom_call.1} parent=1 // pred_region
      _
    $region33: #{tpu_custom_call.1} parent=1 // pred_fallthru
      _
    // Predicated region
    $region34: #{tpu_custom_call.1} parent=1 // pred_check
      _
    $region35: #{tpu_custom_call.1} parent=1 // pred_check_branch
      %56 = sbr.rel (0) target = $region37
    $region36: #{tpu_custom_call.1} parent=1 // pred_region
      _
    $region37: #{tpu_custom_call.1} parent=1 // pred_fallthru
      _
    // Predicated region
    $region38: #{tpu_custom_call.1} parent=1 // pred_check
      _
    $region39: #{tpu_custom_call.1} parent=1 // pred_check_branch
      %58 = sbr.rel (0) target = $region41
    $region40: #{tpu_custom_call.1} parent=1 // pred_region
      _
    $region41: #{tpu_custom_call.1} parent=1 // pred_fallthru
      _
    // Predicated region
    $region42: #{tpu_custom_call.1} parent=1 // pred_check
      _
    $region43: #{tpu_custom_call.1} parent=1 // pred_check_branch
      %60 = sbr.rel (0) target = $region45
    $region44: #{tpu_custom_call.1} parent=1 // pred_region
      _
    $region45: #{tpu_custom_call.1} parent=1 // pred_fallthru
      _
    // Predicated region
    $region46: #{tpu_custom_call.1} parent=1 // pred_check
      _
    $region47: #{tpu_custom_call.1} parent=1 // pred_check_branch
      %62 = sbr.rel (0) target = $region49
    $region48: #{tpu_custom_call.1} parent=1 // pred_region
      _
    $region49: #{tpu_custom_call.1} parent=1 // pred_fallthru
      _
    // Predicated region
    $region50: #{tpu_custom_call.1} parent=1 // pred_check
      _
    $region51: #{tpu_custom_call.1} parent=1 // pred_check_branch
      %64 = sbr.rel (0) target = $region53
    $region52: #{tpu_custom_call.1} parent=1 // pred_region
      _
    $region53: #{tpu_custom_call.1} parent=1 // pred_fallthru
      _
    // Predicated region
    $region54: #{tpu_custom_call.1} parent=1 // pred_check
      _
    $region55: #{tpu_custom_call.1} parent=1 // pred_check_branch
      %66 = sbr.rel (0) target = $region57
    $region56: #{tpu_custom_call.1} parent=1 // pred_region
      _
    $region57: #{tpu_custom_call.1} parent=1 // pred_fallthru
      _
    // Predicated region
    $region58: #{tpu_custom_call.1} parent=1 // pred_check
      _
    $region59: #{tpu_custom_call.1} parent=1 // pred_check_branch
      %68 = sbr.rel (0) target = $region61
    $region60: #{tpu_custom_call.1} parent=1 // pred_region
      _
    $region61: #{tpu_custom_call.1} parent=1 // pred_fallthru
      _
    // Predicated region
    $region62: #{tpu_custom_call.1} parent=1 // pred_check
      _
    $region63: #{tpu_custom_call.1} parent=1 // pred_check_branch
      %70 = sbr.rel (0) target = $region65
    $region64: #{tpu_custom_call.1} parent=1 // pred_region
      %72 = dma.done [#allocation4], 256
    $region65: #{tpu_custom_call.1} parent=1 // pred_fallthru
      _
    %v74 = vld [vmem:[#allocation3] sm:$0xff]
    %v75 = vld [vmem:[#allocation3 + $0x8] sm:$0xff]
    %v76 = vpack.c.bf16 %v75, %v74
    %v77 = vld [vmem:[%s2] sm:$0xff]
    %v78 = vld [vmem:[%s2 + $0x8] sm:$0xff]
    %v79 = vld [vmem:[%s2 + $0x10] sm:$0xff]
    %v80 = vld [vmem:[%s2 + $0x18] sm:$0xff]
    %v81 = vpack.c.bf16 %v78, %v77
    %v82 = vpack.c.bf16 %v80, %v79
    %vm83 = vcmask 261120
    %v85 = vsel %vm83, %v76, 0
    %87 = vmatpush.bf16.msra.mxu0 0
    %88 = vmatpush.bf16.msra.mxu0 0
    %89 = vmatpush.bf16.msra.mxu0 0
    %90 = vmatpush.bf16.msra.mxu0 0
    %91 = vmatpush.bf16.msra.mxu0 0
    %92 = vmatpush.bf16.msra.mxu0 0
    %93 = vmatpush.bf16.msra.mxu0 %v82
    %94 = vmatpush.bf16.msra.mxu0 %v81
    %95 = vmatmul.bf16.gmra.mxu0 %v85
    %v96 = vpop.f32.mrf.mxu0
    %v97 = vadd.f32 0.0, %v96
    %v98 = vpop.f32.mrf.mxu0
    %v99 = vadd.f32 0.0, %v98
    %100 = vdwg.mxu0
    %v101 = vmul.f32 %v97, 0.17677669
    %v102 = vmul.f32 %v99, 0.17677669
    %v103 = vpack.c.bf16 %v101, %v101
    %v104 = vpack.c.bf16 %v102, %v102
    %v105 = vpack.c.bf16 %v97, %v97
    %v106 = vpack.c.bf16 %v99, %v99
    %v107 = vld [vmem:[%s1] sm:$0x1]
    %v108 = vld [vmem:[%s1 + $0x1] sm:$0x1]
    %v111 = vperm.slane %v107, 0
    %v112 = vperm.slane %v108, 0
    %v116 = vunpack.c.l.b16 %v105
    %v117 = vpack.c.b16 %v116, %v116
    %118 = vrot.lane.b32.xlu0 %v117, 96
    %v119 = vpop.permute.xlu0 %118
    %v121 = vsel %vm83, %v103, 0
    %v124 = vsel %vm83, %v119, 0
    %126 = vmatpush.bf16.xpose.msra.mxu0 0
    %127 = vmatpush.bf16.xpose.msra.mxu0 0
    %128 = vmatpush.bf16.xpose.msra.mxu0 0
    %129 = vmatpush.bf16.xpose.msra.mxu0 0
    %130 = vmatpush.bf16.xpose.msra.mxu0 0
    %131 = vmatpush.bf16.xpose.msra.mxu0 0
    %132 = vmatpush.bf16.xpose.msra.mxu0 0
    %133 = vmatpush.bf16.xpose.msra.mxu0 %v124
    %134 = vmatmul.bf16.gmra.mxu0 %v121
    %v135 = vpop.f32.mrf.mxu0
    %v136 = vadd.f32 %v111, %v135
    %v137 = vpop.f32.mrf.mxu0
    %138 = vdwg.mxu0
    %v140 = vunpack.c.l.b16 %v106
    %v141 = vpack.c.b16 %v140, %v140
    %142 = vrot.lane.b32.xlu0 %v141, 96
    %v143 = vpop.permute.xlu0 %142
    %v145 = vsel %vm83, %v104, 0
    %v148 = vsel %vm83, %v143, 0
    %150 = vmatpush.bf16.xpose.msra.mxu0 0
    %151 = vmatpush.bf16.xpose.msra.mxu0 0
    %152 = vmatpush.bf16.xpose.msra.mxu0 0
    %153 = vmatpush.bf16.xpose.msra.mxu0 0
    %154 = vmatpush.bf16.xpose.msra.mxu0 0
    %155 = vmatpush.bf16.xpose.msra.mxu0 0
    %156 = vmatpush.bf16.xpose.msra.mxu0 0
    %157 = vmatpush.bf16.xpose.msra.mxu0 %v148
    %158 = vmatmul.bf16.gmra.mxu0 %v145
    %v159 = vpop.f32.mrf.mxu0
    %v160 = vadd.f32 %v112, %v159
    %v161 = vpop.f32.mrf.mxu0
    %162 = vdwg.mxu0
    %vm163 = vcmask 64512
    %v164 = vsel %vm163, %v136, -inf
    %165 = vmax.xlane.f32.xlu0 %v164
    %v166 = vpop.xlane.xlu0 %165
    %v167 = vsel %vm163, %v160, -inf
    %168 = vmax.xlane.f32.xlu0 %v167
    %v169 = vpop.xlane.xlu0 %168
    %v170 = vsub.f32 %v136, %v166
    %v171 = vsub.f32 %v160, %v169
    %v172 = vmul.f32 %v170, 1.442695
    %v173 = vpow.pop %v172
    %v174 = vmul.f32 %v171, 1.442695
    %v175 = vpow.pop %v174
    %v176 = vsel %vm163, %v173, 0.0
    %177 = vadd.xlane.f32.xlu0 %v176
    %v178 = vpop.xlane.xlu0 %177
    %v179 = vsel %vm163, %v175, 0.0
    %180 = vadd.xlane.f32.xlu0 %v179
    %v181 = vpop.xlane.xlu0 %180
    %v182 = vrcp.pop %v178
    %v183 = vrcp.pop %v181
    %v184 = vmul.f32 %v173, %v182
    %v185 = vmul.f32 %v175, %v183
    %v186 = vpack.c.bf16 %v184, %v184
    %v187 = vpack.c.bf16 %v185, %v185
    %188 = vrot.lane.b32.xlu0 %v117, 64
    %v189 = vpop.permute.xlu0 %188
    %v191 = vsel %vm163, %v186, 0
    %vm193 = vcmask 1043456
    %v195 = vsel %vm193, %v189, 0
    %197 = vmatpush.bf16.msra.mxu0 0
    %198 = vmatpush.bf16.msra.mxu0 0
    %199 = vmatpush.bf16.msra.mxu0 0
    %200 = vmatpush.bf16.msra.mxu0 0
    %201 = vmatpush.bf16.msra.mxu0 0
    %202 = vmatpush.bf16.msra.mxu0 0
    %203 = vmatpush.bf16.msra.mxu0 0
    %204 = vmatpush.bf16.msra.mxu0 %v195
    %205 = vmatmul.bf16.gmra.mxu0 %v191
    %v206 = vpop.f32.mrf.mxu0
    %v207 = vadd.f32 0.0, %v206
    %v208 = vpop.f32.mrf.mxu0
    %209 = vdwg.mxu0
    %210 = vrot.lane.b32.xlu0 %v141, 64
    %v211 = vpop.permute.xlu0 %210
    %v213 = vsel %vm163, %v187, 0
    %v216 = vsel %vm193, %v211, 0
    %218 = vmatpush.bf16.msra.mxu0 0
    %219 = vmatpush.bf16.msra.mxu0 0
    %220 = vmatpush.bf16.msra.mxu0 0
    %221 = vmatpush.bf16.msra.mxu0 0
    %222 = vmatpush.bf16.msra.mxu0 0
    %223 = vmatpush.bf16.msra.mxu0 0
    %224 = vmatpush.bf16.msra.mxu0 0
    %225 = vmatpush.bf16.msra.mxu0 %v216
    %226 = vmatmul.bf16.gmra.mxu0 %v213
    %v227 = vpop.f32.mrf.mxu0
    %v228 = vadd.f32 0.0, %v227
    %v229 = vpop.f32.mrf.mxu0
    %230 = vdwg.mxu0
    %v231 = vpack.c.bf16 %v228, %v207
    %v232 = vld [vmem:[%s3] sm:$0xff]
    %v233 = vld [vmem:[%s3 + $0x8] sm:$0xff]
    %v234 = vld [vmem:[%s3 + $0x10] sm:$0xff]
    %v235 = vld [vmem:[%s3 + $0x18] sm:$0xff]
    %v236 = vpack.c.bf16 %v233, %v232
    %v237 = vpack.c.bf16 %v235, %v234
    %v239 = vsel %vm83, %v231, 0
    %241 = vmatpush.bf16.msra.mxu0 0
    %242 = vmatpush.bf16.msra.mxu0 0
    %243 = vmatpush.bf16.msra.mxu0 0
    %244 = vmatpush.bf16.msra.mxu0 0
    %245 = vmatpush.bf16.msra.mxu0 0
    %246 = vmatpush.bf16.msra.mxu0 0
    %247 = vmatpush.bf16.msra.mxu0 %v237
    %248 = vmatpush.bf16.msra.mxu0 %v236
    %249 = vmatmul.bf16.gmra.mxu0 %v239
    %v250 = vpop.f32.mrf.mxu0
    %v251 = vadd.f32 0.0, %v250
    %v252 = vpop.f32.mrf.mxu0
    %v253 = vadd.f32 0.0, %v252
    %254 = vdwg.mxu0
    %v255 = vadd.f32 %v74, %v251
    %v256 = vadd.f32 %v75, %v253
    %v257 = vsel %vm83, %v255, 0.0
    %258 = vadd.xlane.f32.xlu0 %v257
    %v259 = vpop.xlane.xlu0 %258
    %v260 = vsel %vm83, %v256, 0.0
    %261 = vadd.xlane.f32.xlu0 %v260
    %v262 = vpop.xlane.xlu0 %261
    %v263 = vrcp.pop 32.0
    %v264 = vmul.f32 32.0, %v263
    %v265 = vsub.f32 1.0, %v264
    %v266 = vmul.f32 %v263, %v265
    %v267 = vadd.f32 %v263, %v266
    %vm268 = vweird.f32 %v263
    %v269 = vsel %vm268, %v263, %v267
    %v270 = vmul.f32 %v259, %v269
    %v271 = vmul.f32 %v262, %v269
    %v272 = vsub.f32 %v255, %v270
    %v273 = vsub.f32 %v256, %v271
    %v274 = vmul.f32 %v272, %v272
    %v275 = vmul.f32 %v273, %v273
    %v276 = vsel %vm83, %v274, 0.0
    %277 = vadd.xlane.f32.xlu0 %v276
    %v278 = vpop.xlane.xlu0 %277
    %v279 = vsel %vm83, %v275, 0.0
    %280 = vadd.xlane.f32.xlu0 %v279
    %v281 = vpop.xlane.xlu0 %280
    %v282 = vmul.f32 %v278, %v269
    %v283 = vmul.f32 %v281, %v269
    %v284 = vadd.f32 %v282, 1e-05
    %v285 = vadd.f32 %v283, 1e-05
    %v286 = vrsqrt.pop %v284
    %v287 = vmul.f32 %v286, %v284
    %v288 = vmul.f32 %v287, %v286
    %v289 = vmul.f32 0.5, %v288
    %v290 = vsub.f32 1.5, %v289
    %v291 = vmul.f32 %v286, %v290
    %vm292 = vweird.f32 %v284
    %vm293 = vweird.f32 %v286
    %vm294 = vmor %vm292, %vm293
    %v295 = vsel %vm294, %v286, %v291
    %v296 = vrsqrt.pop %v285
    %v297 = vmul.f32 %v296, %v285
    %v298 = vmul.f32 %v297, %v296
    %v299 = vmul.f32 0.5, %v298
    %v300 = vsub.f32 1.5, %v299
    %v301 = vmul.f32 %v296, %v300
    %vm302 = vweird.f32 %v285
    %vm303 = vweird.f32 %v296
    %vm304 = vmor %vm302, %vm303
    %v305 = vsel %vm304, %v296, %v301
    %v306 = vmul.f32 %v272, %v295
    %v307 = vmul.f32 %v273, %v305
    %v308 = vld [vmem:[%s4] sm:$0x1]
    %v310 = vperm.slane %v308, 0
    %v312 = vmul.f32 %v306, %v310
    %v313 = vmul.f32 %v307, %v310
    %v314 = vld [vmem:[%s5] sm:$0x1]
    %v316 = vperm.slane %v314, 0
    %v318 = vadd.f32 %v312, %v316
    %v319 = vadd.f32 %v313, %v316
    %v320 = vpack.c.bf16 %v319, %v318
    %v321 = vld [vmem:[%s6] sm:$0xff]
    %v322 = vld [vmem:[%s6 + $0x8] sm:$0xff]
    %v323 = vld [vmem:[%s6 + $0x10] sm:$0xff]
    %v324 = vld [vmem:[%s6 + $0x18] sm:$0xff]
    %v325 = vpack.c.bf16 %v322, %v321
    %v326 = vpack.c.bf16 %v324, %v323
    %v327 = vld [vmem:[%s7] sm:$0x1]
    %v329 = vperm.slane %v327, 0
    %v332 = vsel %vm83, %v320, 0
    %334 = vmatpush.bf16.msra.mxu0 0
    %335 = vmatpush.bf16.msra.mxu0 0
    %336 = vmatpush.bf16.msra.mxu0 0
    %337 = vmatpush.bf16.msra.mxu0 0
    %338 = vmatpush.bf16.msra.mxu0 0
    %339 = vmatpush.bf16.msra.mxu0 0
    %340 = vmatpush.bf16.msra.mxu0 %v326
    %341 = vmatpush.bf16.msra.mxu0 %v325
    %342 = vmatmul.bf16.gmra.mxu0 %v332
    %v343 = vpop.f32.mrf.mxu0
    %v344 = vadd.f32 %v329, %v343
    %v345 = vpop.f32.mrf.mxu0
    %v346 = vadd.f32 %v329, %v345
    %347 = vdwg.mxu0
    %v348 = vmul.f32 %v344, %v344
    %v349 = vmul.f32 %v346, %v346
    %v350 = vmul.f32 %v344, %v348
    %v351 = vmul.f32 %v346, %v349
    %v352 = vmul.f32 %v350, 0.044715
    %v353 = vmul.f32 %v351, 0.044715
    %v354 = vadd.f32 %v344, %v352
    %v355 = vadd.f32 %v346, %v353
    %v356 = vmul.f32 %v354, 0.7978846
    %v357 = vmul.f32 %v355, 0.7978846
    %v358 = vtanh.pop %v356
    %v359 = vtanh.pop %v357
    %v360 = vadd.f32 %v358, 1.0
    %v361 = vadd.f32 %v359, 1.0
    %v362 = vmul.f32 %v360, 0.5
    %v363 = vmul.f32 %v361, 0.5
    %v364 = vmul.f32 %v344, %v362
    %v365 = vmul.f32 %v346, %v363
    %v366 = vpack.c.bf16 %v365, %v364
    %v367 = vld [vmem:[%s8] sm:$0xff]
    %v368 = vld [vmem:[%s8 + $0x8] sm:$0xff]
    %v369 = vld [vmem:[%s8 + $0x10] sm:$0xff]
    %v370 = vld [vmem:[%s8 + $0x18] sm:$0xff]
    %v371 = vld [vmem:[%s8 + $0x20] sm:$0xff]
    %v372 = vld [vmem:[%s8 + $0x28] sm:$0xff]
    %v373 = vld [vmem:[%s8 + $0x30] sm:$0xff]
    %v374 = vld [vmem:[%s8 + $0x38] sm:$0xff]
    %v375 = vpack.c.bf16 %v368, %v367
    %v376 = vpack.c.bf16 %v370, %v369
    %v377 = vpack.c.bf16 %v372, %v371
    %v378 = vpack.c.bf16 %v374, %v373
    %v379 = vld [vmem:[%s9] sm:$0x1]
    %v381 = vperm.slane %v379, 0
    %vm383 = vcmask 523264
    %v385 = vsel %vm383, %v366, 0
    %387 = vmatpush.bf16.msra.mxu0 0
    %388 = vmatpush.bf16.msra.mxu0 0
    %389 = vmatpush.bf16.msra.mxu0 0
    %390 = vmatpush.bf16.msra.mxu0 0
    %391 = vmatpush.bf16.msra.mxu0 %v378
    %392 = vmatpush.bf16.msra.mxu0 %v377
    %393 = vmatpush.bf16.msra.mxu0 %v376
    %394 = vmatpush.bf16.msra.mxu0 %v375
    %395 = vmatmul.bf16.gmra.mxu0 %v385
    %v396 = vpop.f32.mrf.mxu0
    %v397 = vadd.f32 %v381, %v396
    %v398 = vpop.f32.mrf.mxu0
    %v399 = vadd.f32 %v381, %v398
    %400 = vdwg.mxu0
    %v401 = vadd.f32 %v318, %v397
    %v402 = vadd.f32 %v319, %v399
    %v403 = vsel %vm83, %v401, 0.0
    %404 = vadd.xlane.f32.xlu0 %v403
    %v405 = vpop.xlane.xlu0 %404
    %v406 = vsel %vm83, %v402, 0.0
    %407 = vadd.xlane.f32.xlu0 %v406
    %v408 = vpop.xlane.xlu0 %407
    %v409 = vmul.f32 %v405, %v269
    %v410 = vmul.f32 %v408, %v269
    %v411 = vsub.f32 %v401, %v409
    %v412 = vsub.f32 %v402, %v410
    %v413 = vmul.f32 %v411, %v411
    %v414 = vmul.f32 %v412, %v412
    %v415 = vsel %vm83, %v413, 0.0
    %416 = vadd.xlane.f32.xlu0 %v415
    %v417 = vpop.xlane.xlu0 %416
    %v418 = vsel %vm83, %v414, 0.0
    %419 = vadd.xlane.f32.xlu0 %v418
    %v420 = vpop.xlane.xlu0 %419
    %v421 = vmul.f32 %v417, %v269
    %v422 = vmul.f32 %v420, %v269
    %v423 = vadd.f32 %v421, 1e-05
    %v424 = vadd.f32 %v422, 1e-05
    %v425 = vrsqrt.pop %v423
    %v426 = vmul.f32 %v425, %v423
    %v427 = vmul.f32 %v426, %v425
    %v428 = vmul.f32 0.5, %v427
    %v429 = vsub.f32 1.5, %v428
    %v430 = vmul.f32 %v425, %v429
    %vm431 = vweird.f32 %v423
    %vm432 = vweird.f32 %v425
    %vm433 = vmor %vm431, %vm432
    %v434 = vsel %vm433, %v425, %v430
    %v435 = vrsqrt.pop %v424
    %v436 = vmul.f32 %v435, %v424
    %v437 = vmul.f32 %v436, %v435
    %v438 = vmul.f32 0.5, %v437
    %v439 = vsub.f32 1.5, %v438
    %v440 = vmul.f32 %v435, %v439
    %vm441 = vweird.f32 %v424
    %vm442 = vweird.f32 %v435
    %vm443 = vmor %vm441, %vm442
    %v444 = vsel %vm443, %v435, %v440
    %v445 = vmul.f32 %v411, %v434
    %v446 = vmul.f32 %v412, %v444
    %v447 = vld [vmem:[%s10] sm:$0x1]
    %v449 = vperm.slane %v447, 0
    %v451 = vmul.f32 %v445, %v449
    %v452 = vmul.f32 %v446, %v449
    %v453 = vld [vmem:[%s11] sm:$0x1]
    %v455 = vperm.slane %v453, 0
    %v457 = vadd.f32 %v451, %v455
    %v458 = vadd.f32 %v452, %v455
    %v461 = vrot.slane %v458, 7
    %vm462 = vcmask 1041409
    %v463 = vsel %vm462, %v461, %v457
    %vm465 = vcmask 254976
    %466 = vst.msk [vmem:[#allocation6] sm:$0x3] %vm465, %v463
    %v467 = vld [vmem:[%s12] sm:$0x1]
    %v469 = vperm.slane %v467, 0
    %v471 = vmul.f32 %v457, %v469
    %v472 = vmul.f32 %v458, %v469
    %v475 = vrot.slane %v472, 7
    %v476 = vsel %vm462, %v475, %v471
    %v478 = vsel %vm465, %v476, 0.0
    %479 = vadd.xlane.f32.xlu0 %v478
    %v480 = vpop.xlane.xlu0 %479
    %v481 = vld [vmem:[#allocation2] sm:$0x1]
    %v483 = vperm.slane %v481, 0
    %v485 = vadd.f32 %v480, %v483
    %vm486 = vcmask 1024
    %487 = vst.msk [vmem:[%s16] sm:$0x3] %vm486, %v485
    %v488 = vld [vmem:[%s14] sm:$0x3]
    %v489 = vmax.f32 %v485, 0.0
    %v490 = vmul.f32 %v485, %v488
    %v491 = vsub.f32 %v489, %v490
    %v492 = vand.u32 2147483647, %v485
    %v493 = vsub.f32 0.0, %v492
    %v494 = vmul.f32 %v493, 1.442695
    %v495 = vpow.pop %v494
    %v496 = vadd.f32 %v495, 1.0
    %v497 = vlog2.pop %v496
    %v498 = vmul.f32 %v497, 0.6931472
    %v499 = vmul.f32 -0.5, %v495
    %v500 = vadd.f32 %v499, 1.0
    %v501 = vmul.f32 %v500, %v495
    %v502 = vand.u32 2147483647, %v495
    %vm503 = vcmp.lt.f32.partialorder %v502, 0.0004427343
    %v504 = vsel %vm503, %v501, %v498
    %v505 = vadd.f32 %v491, %v504
    %v506 = vsel %vm486, %v505, 0.0
    %507 = vadd.xlane.f32.xlu0 %v506
    %v508 = vpop.xlane.xlu0 %507
    %v509 = vrot.slane %v508, 4
    %v510 = vadd.f32 %v508, %v509
    %v511 = vrot.slane %v510, 2
    %v512 = vadd.f32 %v510, %v511
    %v513 = vrot.slane %v512, 1
    %v514 = vadd.f32 %v512, %v513
    %s515 = vtos %v514
    %v516 = vstv %s515
    %v517 = vrcp.pop 2.0
    %v518 = vmul.f32 2.0, %v517
    %v519 = vsub.f32 1.0, %v518
    %v520 = vmul.f32 %v517, %v519
    %v521 = vadd.f32 %v517, %v520
    %vm522 = vweird.f32 %v517
    %v523 = vsel %vm522, %v517, %v521
    %v524 = vmul.f32 %v516, %v523
    %vm525 = vcmask 0
    %526 = vst.msk [vmem:[#allocation7] sm:$0x1] %vm525, %v524
    // Predicated region
    $region66: #{tpu_custom_call.1} parent=1 // pred_check
      _
    $region67: #{tpu_custom_call.1} parent=1 // pred_check_branch
      %528 = sbr.rel (0) target = $region69
    $region68: #{tpu_custom_call.1} parent=1 // pred_region
      %530 = vsyncadd [#allocation5], 0
      %s532 = sshll.u32 [#allocation6], 4
      %s533 = int_to_ptr.vmem [resolvable:$true] %s532
      %s534 = sshll.u32 %s15, 4
      %s535 = int_to_ptr.hbm [resolvable:$true] %s534
      %537 = dma.vmem_to_hbm [thread:$0]  %s533, 32, %s535, [#allocation5]
    $region69: #{tpu_custom_call.1} parent=1 // pred_fallthru
      _
    // Predicated region
    $region70: #{tpu_custom_call.1} parent=1 // pred_check
      _
    $region71: #{tpu_custom_call.1} parent=1 // pred_check_branch
      %539 = sbr.rel (0) target = $region73
    $region72: #{tpu_custom_call.1} parent=1 // pred_region
      _
    $region73: #{tpu_custom_call.1} parent=1 // pred_fallthru
      _
    // Predicated region
    $region74: #{tpu_custom_call.1} parent=1 // pred_check
      _
    $region75: #{tpu_custom_call.1} parent=1 // pred_check_branch
      %541 = sbr.rel (0) target = $region77
    $region76: #{tpu_custom_call.1} parent=1 // pred_region
      %543 = vsyncadd [#allocation8], 0
      %s545 = sshll.u32 [#allocation7], 4
      %s546 = int_to_ptr.vmem [resolvable:$true] %s545
      %s547 = sshll.u32 %s17, 4
      %s548 = int_to_ptr.hbm [resolvable:$true] %s547
      %550 = dma.vmem_to_hbm [thread:$0]  %s546, 16, %s548, [#allocation8]
    $region77: #{tpu_custom_call.1} parent=1 // pred_fallthru
      _
    // Predicated region
    $region78: #{tpu_custom_call.1} parent=1 // pred_check
      _
    $region79: #{tpu_custom_call.1} parent=1 // pred_check_branch
      %552 = sbr.rel (0) target = $region81
    $region80: #{tpu_custom_call.1} parent=1 // pred_region
      %554 = dma.done [#allocation5], 32
    $region81: #{tpu_custom_call.1} parent=1 // pred_fallthru
      _
    // Predicated region
    $region82: #{tpu_custom_call.1} parent=1 // pred_check
      _
    $region83: #{tpu_custom_call.1} parent=1 // pred_check_branch
      %556 = sbr.rel (0) target = $region85
    $region84: #{tpu_custom_call.1} parent=1 // pred_region
      _
    $region85: #{tpu_custom_call.1} parent=1 // pred_fallthru
      _
    // Predicated region
    $region86: #{tpu_custom_call.1} parent=1 // pred_check
      _
    $region87: #{tpu_custom_call.1} parent=1 // pred_check_branch
      %558 = sbr.rel (0) target = $region89
    $region88: #{tpu_custom_call.1} parent=1 // pred_region
      %560 = dma.done [#allocation8], 16
    $region89: #{tpu_custom_call.1} parent=1 // pred_fallthru
      _
    %561 = vsyncpa [#allocation4], 1
    %562 = vsyncpa [#allocation5], 1
    %563 = vsyncpa [#allocation8], 1

</llo_original>
